<compile_context>
chip_gen: v7x
topology: tpu7x:2x2x1
jax: 0.10.0
libtpu: 0.0.40
codegen_flags: <defaults>
</compile_context>

<pallas_src>
from functools import partial

import jax
import jax.numpy as jnp
import numpy as np
from jax.experimental import pallas as pl
from jax.experimental.pallas import tpu as pltpu


# ------------------------------ fused kernel -------------------------------- #

def _fused_kernel(n_leaves, B, levels,
                  leaves_ref, wi_ref, bi_ref, wlr_ref, blr_ref, wo_ref, bo_ref,
                  h_ref, logp_ref, acts_ref):
    """levels: static tuple (per tree depth) of tuples of (left_slot, right_slot).
    Output slots for level k are contiguous, starting right after level k-1.
    acts_ref: flat (n_nodes*B, H) VMEM slot stack; leaf i occupies rows
    [i*B, (i+1)*B)."""
    H = acts_ref.shape[1]

    # --- 1) all leaves in one sublane-dense matmul + ONE contiguous store ----
    h_leaf = jnp.tanh(
        jnp.dot(leaves_ref[...], wi_ref[...],
                preferred_element_type=jnp.float32) + bi_ref[...])
    acts_ref[0:n_leaves * B, :] = h_leaf

    # --- 2) internal nodes, level-batched, single fused dot per level --------
    wlr = wlr_ref[...]                  # (2H, H), hoisted / loop-invariant
    blr = blr_ref[...]                  # (1, H) pre-summed bias (broadcast in add)

    slot = n_leaves                     # next output slot (static Python int)
    for level in levels:                # static unroll over tree depth
        n = len(level)
        # gather children: (n*B, 2H) via static Ref slices (zero-cost views)
        lr = jnp.concatenate(
            [jnp.concatenate([acts_ref[l * B:(l + 1) * B, :],
                              acts_ref[r * B:(r + 1) * B, :]], axis=1)
             for (l, r) in level], axis=0)
        h_lvl = jnp.tanh(
            jnp.dot(lr, wlr, preferred_element_type=jnp.float32) + blr)
        acts_ref[slot * B:(slot + n) * B, :] = h_lvl   # contiguous per-level store
        slot += n

    # --- 3) root hidden + log-softmax classify head --------------------------
    root_slot = slot - 1                # root is always the last assigned slot
    root = acts_ref[root_slot * B:(root_slot + 1) * B, :]
    h_ref[...] = root
    logits = jnp.dot(root, wo_ref[...],
                     preferred_element_type=jnp.float32) + bo_ref[...]
    m = jnp.max(logits, axis=1, keepdims=True)
    z = logits - m
    logp_ref[...] = z - jnp.log(jnp.sum(jnp.exp(z), axis=1, keepdims=True))


# ---------------------------- pallas wrapper --------------------------------- #

@partial(jax.jit, static_argnums=(0,))
def _fused_forward(levels, leaves, wi_t, bi, wlr_t, blr, wo_t, bo):
    """levels: static schedule (tuple of tuples of (l_slot, r_slot)).
    leaves: (L, B, I) stacked leaf inputs.  Returns (root_hidden, log_probs)."""
    L, B, I = leaves.shape
    H = wi_t.shape[1]
    O = wo_t.shape[1]
    n_internal = sum(len(lv) for lv in levels)
    n_nodes = L + n_internal
    leaves_flat = leaves.reshape(L * B, I)          # XLA reshape, outside kernel

    kernel = partial(_fused_kernel, L, B, levels)

    h, logp = pl.pallas_call(
        kernel,
        out_shape=(jax.ShapeDtypeStruct((B, H), jnp.float32),
                   jax.ShapeDtypeStruct((B, O), jnp.float32)),
        grid=(1,),
        in_specs=[
            pl.BlockSpec((L * B, I), lambda g: (0, 0)),   # leaves (all, resident)
            pl.BlockSpec((I, H), lambda g: (0, 0)),       # Wi^T
            pl.BlockSpec((1, H), lambda g: (0, 0)),       # b_i
            pl.BlockSpec((2 * H, H), lambda g: (0, 0)),   # [Wl^T; Wr^T]
            pl.BlockSpec((1, H), lambda g: (0, 0)),       # b_l + b_r
            pl.BlockSpec((H, O), lambda g: (0, 0)),       # Wo^T
            pl.BlockSpec((1, O), lambda g: (0, 0)),       # b_o
        ],
        out_specs=(pl.BlockSpec((B, H), lambda g: (0, 0)),
                   pl.BlockSpec((B, O), lambda g: (0, 0))),
        scratch_shapes=[pltpu.VMEM((n_nodes * B, H), jnp.float32)],
        compiler_params=pltpu.CompilerParams(
            dimension_semantics=("arbitrary",)),
    )(leaves_flat, wi_t, bi, wlr_t, blr, wo_t, bo)
    return h, logp


# ------------------------------- module -------------------------------------- #

class RecursiveNNPallas:
    """Pallas port of the PyTorch RecursiveNN. Trees are nested Python tuples
    whose leaves are jnp arrays of shape [batch, input_size]."""

    def __init__(self, input_size, hidden_size, output_size, key):
        def init_linear(k, in_f, out_f):
            k1, k2 = jax.random.split(k)
            bound = 1.0 / float(np.sqrt(in_f))
            w = jax.random.uniform(k1, (out_f, in_f), jnp.float32, -bound, bound)
            b = jax.random.uniform(k2, (1, out_f), jnp.float32, -bound, bound)
            return w, b

        k1, k2, k3, k4 = jax.random.split(key, 4)
        # PyTorch nn.Linear convention [out, in] (used by the pure-JAX reference)
        self.w_i2h, self.b_i2h = init_linear(k1, input_size, hidden_size)
        self.w_l, self.b_l = init_linear(k2, hidden_size, hidden_size)
        self.w_r, self.b_r = init_linear(k3, hidden_size, hidden_size)
        self.w_h2o, self.b_h2o = init_linear(k4, hidden_size, output_size)

        # Kernel-friendly params: pre-transposed [in, out]; left/right weights
        # pre-concatenated into (2H, H); node biases pre-summed.
        self.wi_t = jnp.asarray(self.w_i2h.T)                         # (I, H)
        self.wlr_t = jnp.concatenate([self.w_l.T, self.w_r.T], 0)     # (2H, H)
        self.blr = self.b_l + self.b_r                                # (1, H)
        self.wo_t = jnp.asarray(self.w_h2o.T)                         # (H, O)

    # -- flatten nested-tuple tree into (static level schedule, stacked leaves)
    def _flatten(self, tree):
        leaves = []
        nodes = []                       # (left_tag, right_tag, level)

        def rec(t):
            if isinstance(t, (jnp.ndarray, np.ndarray)):
                leaves.append(jnp.asarray(t, jnp.float32))
                return ("leaf", len(leaves) - 1, 0)
            lt = rec(t[0])
            rt = rec(t[1])
            level = 1 + max(lt[2], rt[2])
            nodes.append(((lt[0], lt[1]), (rt[0], rt[1]), level))
            return ("node", len(nodes) - 1, level)

        rec(tree)
        L = len(leaves)

        # Assign slots level-by-level so each level's outputs are contiguous.
        max_level = max((lv for _, _, lv in nodes), default=0)
        slot_of_node = {}
        level_ids = []
        next_slot = L
        for lv in range(1, max_level + 1):
            ids = [i for i, (_, _, l) in enumerate(nodes) if l == lv]
            for i in ids:
                slot_of_node[i] = next_slot
                next_slot += 1
            level_ids.append(ids)

        def slot(tag):
            kind, idx = tag
            return idx if kind == "leaf" else slot_of_node[idx]

        levels = tuple(
            tuple((slot(nodes[i][0]), slot(nodes[i][1])) for i in ids)
            for ids in level_ids)
        leaves_arr = jnp.stack(leaves, axis=0)       # (L, B, I)
        return levels, leaves_arr

    def _run(self, tree):
        levels, leaves = self._flatten(tree)
        return _fused_forward(levels, leaves, self.wi_t, self.b_i2h,
                              self.wlr_t, self.blr, self.wo_t, self.b_h2o)

    def forward(self, tree):
        h, _ = self._run(tree)
        return h

    def classify(self, tree):
        _, logp = self._run(tree)
        return logp


# --------------------------- reference (pure JAX) ---------------------------- #

def _ref_forward(model, tree):
    if isinstance(tree, (jnp.ndarray, np.ndarray)):
        return jnp.tanh(tree @ model.w_i2h.T + model.b_i2h)
    l = _ref_forward(model, tree[0])
    r = _ref_forward(model, tree[1])
    return jnp.tanh(l @ model.w_l.T + model.b_l + r @ model.w_r.T + model.b_r)


def _ref_classify(model, tree):
    h = _ref_forward(model, tree)
    logits = h @ model.w_h2o.T + model.b_h2o
    return jax.nn.log_softmax(logits, axis=1)


# ---------------------------------- main ------------------------------------- #

if __name__ == "__main__":
    batch, input_size, hidden_size, output_size = 2, 16, 32, 8

    key = jax.random.PRNGKey(0)
    k_model, k_l1, k_l2, k_l3 = jax.random.split(key, 4)

    model = RecursiveNNPallas(input_size, hidden_size, output_size, k_model)

    # Small binary tree: ((leaf1, leaf2), leaf3)
    leaf1 = jax.random.normal(k_l1, (batch, input_size), jnp.float32)
    leaf2 = jax.random.normal(k_l2, (batch, input_size), jnp.float32)
    leaf3 = jax.random.normal(k_l3, (batch, input_size), jnp.float32)
    tree = ((leaf1, leaf2), leaf3)

    h = model.forward(tree)
    logp = model.classify(tree)
    jax.block_until_ready(h)
    jax.block_until_ready(logp)

    # correctness check vs pure-JAX reference
    np.testing.assert_allclose(np.asarray(h), np.asarray(_ref_forward(model, tree)),
                               rtol=1e-5, atol=1e-5)
    np.testing.assert_allclose(np.asarray(logp), np.asarray(_ref_classify(model, tree)),
                               rtol=1e-5, atol=1e-5)

    # also exercise the single-leaf edge case (tree is a bare tensor)
    h1 = model.forward(leaf1)
    logp1 = model.classify(leaf1)
    jax.block_until_ready(logp1)
    np.testing.assert_allclose(np.asarray(h1), np.asarray(_ref_forward(model, leaf1)),
                               rtol=1e-5, atol=1e-5)
    np.testing.assert_allclose(np.asarray(logp1), np.asarray(_ref_classify(model, leaf1)),
                               rtol=1e-5, atol=1e-5)

    print("KERNEL_OK")
</pallas_src>

<mosaic_0001>
module attributes {stable_mosaic.version = 11 : i64} {
  func.func @_fused_kernel(%arg0: i32, %arg1: memref<6x16xf32, #tpu.memory_space<vmem>>, %arg2: memref<16x32xf32, #tpu.memory_space<vmem>>, %arg3: memref<1x32xf32, #tpu.memory_space<vmem>>, %arg4: memref<64x32xf32, #tpu.memory_space<vmem>>, %arg5: memref<1x32xf32, #tpu.memory_space<vmem>>, %arg6: memref<32x8xf32, #tpu.memory_space<vmem>>, %arg7: memref<1x8xf32, #tpu.memory_space<vmem>>, %arg8: memref<2x32xf32, #tpu.memory_space<vmem>>, %arg9: memref<2x8xf32, #tpu.memory_space<vmem>>, %arg10: memref<10x32xf32, #tpu.memory_space<vmem>>) attributes {dimension_semantics = [#tpu.dimension_semantics<arbitrary>], iteration_bounds = array<i64: 1>, scalar_prefetch = 0 : i64, scratch_operands = 1 : i64, tpu.core_type = #tpu.core_type<tc>, window_params = [{pipeline_mode = #tpu.pipeline_mode<synchronous>, transform_indices = @transform_0, window_bounds = array<i64: 6, 16>}, {pipeline_mode = #tpu.pipeline_mode<synchronous>, transform_indices = @transform_1, window_bounds = array<i64: 16, 32>}, {pipeline_mode = #tpu.pipeline_mode<synchronous>, transform_indices = @transform_2, window_bounds = array<i64: 1, 32>}, {pipeline_mode = #tpu.pipeline_mode<synchronous>, transform_indices = @transform_3, window_bounds = array<i64: 64, 32>}, {pipeline_mode = #tpu.pipeline_mode<synchronous>, transform_indices = @transform_4, window_bounds = array<i64: 1, 32>}, {pipeline_mode = #tpu.pipeline_mode<synchronous>, transform_indices = @transform_5, window_bounds = array<i64: 32, 8>}, {pipeline_mode = #tpu.pipeline_mode<synchronous>, transform_indices = @transform_6, window_bounds = array<i64: 1, 8>}, {pipeline_mode = #tpu.pipeline_mode<synchronous>, transform_indices = @transform_7, window_bounds = array<i64: 2, 32>}, {pipeline_mode = #tpu.pipeline_mode<synchronous>, transform_indices = @transform_8, window_bounds = array<i64: 2, 8>}]} {
    %c0 = arith.constant 0 : index
    %c0_0 = arith.constant 0 : index
    %0 = vector.load %arg1[%c0, %c0_0] : memref<6x16xf32, #tpu.memory_space<vmem>>, vector<6x16xf32>
    %c0_1 = arith.constant 0 : index
    %c0_2 = arith.constant 0 : index
    %1 = vector.load %arg2[%c0_1, %c0_2] : memref<16x32xf32, #tpu.memory_space<vmem>>, vector<16x32xf32>
    %cst = arith.constant dense<0.000000e+00> : vector<6x32xf32>
    %2 = tpu.matmul %0, %1, %cst {dimension_numbers = #tpu.dot_dimension_numbers<[1], [0], [0], [1], [0, 0, 1, 1], [], []>} : vector<6x16xf32>, vector<16x32xf32>, vector<6x32xf32> -> vector<6x32xf32>
    %c0_3 = arith.constant 0 : index
    %c0_4 = arith.constant 0 : index
    %3 = vector.load %arg3[%c0_3, %c0_4] : memref<1x32xf32, #tpu.memory_space<vmem>>, vector<1x32xf32>
    %4 = vector.broadcast %3 : vector<1x32xf32> to vector<6x32xf32>
    %5 = arith.addf %2, %4 : vector<6x32xf32>
    %6 = math.tanh %5 : vector<6x32xf32>
    %c0_5 = arith.constant 0 : index
    %c0_6 = arith.constant 0 : index
    %7 = vector.load %arg10[%c0_5, %c0_6] : memref<10x32xf32, #tpu.memory_space<vmem>>, vector<6x32xf32>
    tpu.vector_store %arg10[%c0_5, %c0_6], %6 {strides = array<i32>} : memref<10x32xf32, #tpu.memory_space<vmem>>, vector<6x32xf32>,
    %c0_7 = arith.constant 0 : index
    %c0_8 = arith.constant 0 : index
    %8 = vector.load %arg4[%c0_7, %c0_8] : memref<64x32xf32, #tpu.memory_space<vmem>>, vector<64x32xf32>
    %c0_9 = arith.constant 0 : index
    %c0_10 = arith.constant 0 : index
    %9 = vector.load %arg5[%c0_9, %c0_10] : memref<1x32xf32, #tpu.memory_space<vmem>>, vector<1x32xf32>
    %c0_11 = arith.constant 0 : index
    %c0_12 = arith.constant 0 : index
    %10 = vector.load %arg10[%c0_11, %c0_12] : memref<10x32xf32, #tpu.memory_space<vmem>>, vector<2x32xf32>
    %c2 = arith.constant 2 : index
    %c0_13 = arith.constant 0 : index
    %11 = vector.load %arg10[%c2, %c0_13] : memref<10x32xf32, #tpu.memory_space<vmem>>, vector<2x32xf32>
    %12 = tpu.concatenate %10, %11 in 1 : vector<2x32xf32>, vector<2x32xf32> -> vector<2x64xf32>
    %cst_14 = arith.constant dense<0.000000e+00> : vector<2x32xf32>
    %13 = tpu.matmul %12, %8, %cst_14 {dimension_numbers = #tpu.dot_dimension_numbers<[1], [0], [0], [1], [0, 0, 1, 1], [], []>} : vector<2x64xf32>, vector<64x32xf32>, vector<2x32xf32> -> vector<2x32xf32>
    %14 = vector.broadcast %9 : vector<1x32xf32> to vector<2x32xf32>
    %15 = arith.addf %13, %14 : vector<2x32xf32>
    %16 = math.tanh %15 : vector<2x32xf32>
    %c6 = arith.constant 6 : index
    %c0_15 = arith.constant 0 : index
    %17 = vector.load %arg10[%c6, %c0_15] : memref<10x32xf32, #tpu.memory_space<vmem>>, vector<2x32xf32>
    tpu.vector_store %arg10[%c6, %c0_15], %16 {strides = array<i32>} : memref<10x32xf32, #tpu.memory_space<vmem>>, vector<2x32xf32>,
    %c6_16 = arith.constant 6 : index
    %c0_17 = arith.constant 0 : index
    %18 = vector.load %arg10[%c6_16, %c0_17] : memref<10x32xf32, #tpu.memory_space<vmem>>, vector<2x32xf32>
    %c4 = arith.constant 4 : index
    %c0_18 = arith.constant 0 : index
    %19 = vector.load %arg10[%c4, %c0_18] : memref<10x32xf32, #tpu.memory_space<vmem>>, vector<2x32xf32>
    %20 = tpu.concatenate %18, %19 in 1 : vector<2x32xf32>, vector<2x32xf32> -> vector<2x64xf32>
    %cst_19 = arith.constant dense<0.000000e+00> : vector<2x32xf32>
    %21 = tpu.matmul %20, %8, %cst_19 {dimension_numbers = #tpu.dot_dimension_numbers<[1], [0], [0], [1], [0, 0, 1, 1], [], []>} : vector<2x64xf32>, vector<64x32xf32>, vector<2x32xf32> -> vector<2x32xf32>
    %22 = vector.broadcast %9 : vector<1x32xf32> to vector<2x32xf32>
    %23 = arith.addf %21, %22 : vector<2x32xf32>
    %24 = math.tanh %23 : vector<2x32xf32>
    %c8 = arith.constant 8 : index
    %c0_20 = arith.constant 0 : index
    %25 = vector.load %arg10[%c8, %c0_20] : memref<10x32xf32, #tpu.memory_space<vmem>>, vector<2x32xf32>
    tpu.vector_store %arg10[%c8, %c0_20], %24 {strides = array<i32>} : memref<10x32xf32, #tpu.memory_space<vmem>>, vector<2x32xf32>,
    %c8_21 = arith.constant 8 : index
    %c0_22 = arith.constant 0 : index
    %26 = vector.load %arg10[%c8_21, %c0_22] : memref<10x32xf32, #tpu.memory_space<vmem>>, vector<2x32xf32>
    %c0_23 = arith.constant 0 : index
    %c0_24 = arith.constant 0 : index
    %27 = vector.load %arg8[%c0_23, %c0_24] : memref<2x32xf32, #tpu.memory_space<vmem>>, vector<2x32xf32>
    tpu.vector_store %arg8[%c0_23, %c0_24], %26 {strides = array<i32>} : memref<2x32xf32, #tpu.memory_space<vmem>>, vector<2x32xf32>,
    %c0_25 = arith.constant 0 : index
    %c0_26 = arith.constant 0 : index
    %28 = vector.load %arg6[%c0_25, %c0_26] : memref<32x8xf32, #tpu.memory_space<vmem>>, vector<32x8xf32>
    %cst_27 = arith.constant dense<0.000000e+00> : vector<2x8xf32>
    %29 = tpu.matmul %26, %28, %cst_27 {dimension_numbers = #tpu.dot_dimension_numbers<[1], [0], [0], [1], [0, 0, 1, 1], [], []>} : vector<2x32xf32>, vector<32x8xf32>, vector<2x8xf32> -> vector<2x8xf32>
    %c0_28 = arith.constant 0 : index
    %c0_29 = arith.constant 0 : index
    %30 = vector.load %arg7[%c0_28, %c0_29] : memref<1x8xf32, #tpu.memory_space<vmem>>, vector<1x8xf32>
    %31 = vector.broadcast %30 : vector<1x8xf32> to vector<2x8xf32>
    %32 = arith.addf %29, %31 : vector<2x8xf32>
    %cst_30 = arith.constant dense<0xFF800000> : vector<2xf32>
    %33 = vector.multi_reduction <maximumf>, %32, %cst_30 [1] : vector<2x8xf32> to vector<2xf32>
    %34 = vector.shape_cast %33 : vector<2xf32> to vector<2x1xf32>
    %35 = vector.broadcast %34 : vector<2x1xf32> to vector<2x8xf32>
    %36 = arith.subf %32, %35 : vector<2x8xf32>
    %37 = math.exp %36 : vector<2x8xf32>
    %cst_31 = arith.constant dense<0.000000e+00> : vector<2xf32>
    %38 = vector.multi_reduction <add>, %37, %cst_31 [1] : vector<2x8xf32> to vector<2xf32>
    %39 = vector.shape_cast %38 : vector<2xf32> to vector<2x1xf32>
    %40 = math.log %39 : vector<2x1xf32>
    %41 = vector.broadcast %40 : vector<2x1xf32> to vector<2x8xf32>
    %42 = arith.subf %36, %41 : vector<2x8xf32>
    %c0_32 = arith.constant 0 : index
    %c0_33 = arith.constant 0 : index
    %43 = vector.load %arg9[%c0_32, %c0_33] : memref<2x8xf32, #tpu.memory_space<vmem>>, vector<2x8xf32>
    tpu.vector_store %arg9[%c0_32, %c0_33], %42 {strides = array<i32>} : memref<2x8xf32, #tpu.memory_space<vmem>>, vector<2x8xf32>,
    return
  }
  func.func @transform_0(%arg0: i32) -> (i32, i32) {
    %c0_i32 = arith.constant 0 : i32
    %c0_i32_0 = arith.constant 0 : i32
    %c0_i32_1 = arith.constant 0 : i32
    return %c0_i32, %c0_i32_0 : i32, i32
  }
  func.func @transform_1(%arg0: i32) -> (i32, i32) {
    %c0_i32 = arith.constant 0 : i32
    %c0_i32_0 = arith.constant 0 : i32
    %c0_i32_1 = arith.constant 0 : i32
    return %c0_i32, %c0_i32_0 : i32, i32
  }
  func.func @transform_2(%arg0: i32) -> (i32, i32) {
    %c0_i32 = arith.constant 0 : i32
    %c0_i32_0 = arith.constant 0 : i32
    %c0_i32_1 = arith.constant 0 : i32
    return %c0_i32, %c0_i32_0 : i32, i32
  }
  func.func @transform_3(%arg0: i32) -> (i32, i32) {
    %c0_i32 = arith.constant 0 : i32
    %c0_i32_0 = arith.constant 0 : i32
    %c0_i32_1 = arith.constant 0 : i32
    return %c0_i32, %c0_i32_0 : i32, i32
  }
  func.func @transform_4(%arg0: i32) -> (i32, i32) {
    %c0_i32 = arith.constant 0 : i32
    %c0_i32_0 = arith.constant 0 : i32
    %c0_i32_1 = arith.constant 0 : i32
    return %c0_i32, %c0_i32_0 : i32, i32
  }
  func.func @transform_5(%arg0: i32) -> (i32, i32) {
    %c0_i32 = arith.constant 0 : i32
    %c0_i32_0 = arith.constant 0 : i32
    %c0_i32_1 = arith.constant 0 : i32
    return %c0_i32, %c0_i32_0 : i32, i32
  }
  func.func @transform_6(%arg0: i32) -> (i32, i32) {
    %c0_i32 = arith.constant 0 : i32
    %c0_i32_0 = arith.constant 0 : i32
    %c0_i32_1 = arith.constant 0 : i32
    return %c0_i32, %c0_i32_0 : i32, i32
  }
  func.func @transform_7(%arg0: i32) -> (i32, i32) {
    %c0_i32 = arith.constant 0 : i32
    %c0_i32_0 = arith.constant 0 : i32
    %c0_i32_1 = arith.constant 0 : i32
    return %c0_i32, %c0_i32_0 : i32, i32
  }
  func.func @transform_8(%arg0: i32) -> (i32, i32) {
    %c0_i32 = arith.constant 0 : i32
    %c0_i32_0 = arith.constant 0 : i32
    %c0_i32_1 = arith.constant 0 : i32
    return %c0_i32, %c0_i32_0 : i32, i32
  }
}

</mosaic_0001>

<llo_original>
// kernel: _fused_forward.1
$region0: #{_fused_forward.1}
  #allocation0 [shape = 'u32[]', space=smem, size = 0x4, offset = 0x4, fixed_abs, tag = 'smem constant byte address 0x4 - core index']
  #allocation1 [shape = 'u32[144,128]{1,0:T(1,128)}', space=vmem, size = 0x12000, scoped, tag = 'internal scratch']
  #allocation2 [shape = 'f32[10,32]{1,0:T(8,128)}', space=vmem, size = 0x2000, scoped, tag = 'scratch operand']
  %s0 = inlined_call_operand.vmem [shape: f32[6,16], index: 0, kind: input, shape index: {}]
  %s1 = inlined_call_operand.vmem [shape: f32[16,32], index: 1, kind: input, shape index: {}]
  %s2 = inlined_call_operand.vmem [shape: f32[1,32], index: 2, kind: input, shape index: {}]
  %s3 = inlined_call_operand.vmem [shape: f32[64,32], index: 3, kind: input, shape index: {}]
  %s4 = inlined_call_operand.vmem [shape: f32[1,32], index: 4, kind: input, shape index: {}]
  %s5 = inlined_call_operand.vmem [shape: f32[32,8], index: 5, kind: input, shape index: {}]
  %s6 = inlined_call_operand.vmem [shape: f32[1,8], index: 6, kind: input, shape index: {}]
  %s7 = inlined_call_operand.hbm [shape: f32[2,32], index: 7, kind: output, shape index: {0}]
  %s8 = inlined_call_operand.hbm [shape: f32[2,8], index: 8, kind: output, shape index: {1}]
  %9 = xla_tuple %s7, %s8
  %s10 = sld [smem:[#allocation0]]
  $region46: #{_fused_forward.1} parent=0
    _
  %s12 = ssub.s32 1, %s10
  %s13 = scalar_select 0, %s12, %s10
  $region1: #{_fused_forward.1} parent=0
    #allocation3 [shape = 'u8[1024]{0}', space=vmem, size = 0x400, scoped, tag = 'output window, operand 0, single buffered']
    #allocation4 [shape = 's32[1]{0}', space=sflag, size = 0x4, scoped, tag = 'scoped memory for _fused_forward.1']
    #allocation5 [shape = 'u8[1024]{0}', space=vmem, size = 0x400, scoped, tag = 'output window, operand 1, single buffered']
    #allocation6 [shape = 's32[1]{0}', space=sflag, size = 0x4, scoped, tag = 'scoped memory for _fused_forward.1']
    %14 = vsyncpa [#allocation4], 0
    %15 = vsyncpa [#allocation6], 0
    // Predicated region
    $region2: #{_fused_forward.1} parent=1 // pred_check
      _
    $region3: #{_fused_forward.1} parent=1 // pred_check_branch
      %17 = sbr.rel (0) target = $region5
    $region4: #{_fused_forward.1} parent=1 // pred_region
      _
    $region5: #{_fused_forward.1} parent=1 // pred_fallthru
      _
    // Predicated region
    $region6: #{_fused_forward.1} parent=1 // pred_check
      _
    $region7: #{_fused_forward.1} parent=1 // pred_check_branch
      %19 = sbr.rel (0) target = $region9
    $region8: #{_fused_forward.1} parent=1 // pred_region
      _
    $region9: #{_fused_forward.1} parent=1 // pred_fallthru
      _
    // Predicated region
    $region10: #{_fused_forward.1} parent=1 // pred_check
      _
    $region11: #{_fused_forward.1} parent=1 // pred_check_branch
      %21 = sbr.rel (0) target = $region13
    $region12: #{_fused_forward.1} parent=1 // pred_region
      _
    $region13: #{_fused_forward.1} parent=1 // pred_fallthru
      _
    // Predicated region
    $region14: #{_fused_forward.1} parent=1 // pred_check
      _
    $region15: #{_fused_forward.1} parent=1 // pred_check_branch
      %23 = sbr.rel (0) target = $region17
    $region16: #{_fused_forward.1} parent=1 // pred_region
      _
    $region17: #{_fused_forward.1} parent=1 // pred_fallthru
      _
    // Predicated region
    $region18: #{_fused_forward.1} parent=1 // pred_check
      _
    $region19: #{_fused_forward.1} parent=1 // pred_check_branch
      %25 = sbr.rel (0) target = $region21
    $region20: #{_fused_forward.1} parent=1 // pred_region
      _
    $region21: #{_fused_forward.1} parent=1 // pred_fallthru
      _
    // Predicated region
    $region22: #{_fused_forward.1} parent=1 // pred_check
      _
    $region23: #{_fused_forward.1} parent=1 // pred_check_branch
      %27 = sbr.rel (0) target = $region25
    $region24: #{_fused_forward.1} parent=1 // pred_region
      _
    $region25: #{_fused_forward.1} parent=1 // pred_fallthru
      _
    // Predicated region
    $region26: #{_fused_forward.1} parent=1 // pred_check
      _
    $region27: #{_fused_forward.1} parent=1 // pred_check_branch
      %29 = sbr.rel (0) target = $region29
    $region28: #{_fused_forward.1} parent=1 // pred_region
      _
    $region29: #{_fused_forward.1} parent=1 // pred_fallthru
      _
    %v30 = vld [vmem:[%s0] sm:$0x3f]
    %v31 = vld [vmem:[%s1] sm:$0xff]
    %v32 = vld [vmem:[%s1 + $0x8] sm:$0xff]
    %v33 = vld [vmem:[%s2] sm:$0x1]
    %v35 = vlaneseq
    %v36 = vshrl.u32 %v35, 7
    %v37 = vsub.s32 0, %v36
    %v38 = vrot.slane %v33, %v37
    %vm40 = vcmask 130048
    %v42 = vsel %vm40, %v30, 0
    %44 = vmatprep.subr.mxu0 0.0
    %45 = vmatpush1.msra.mxu0 %v31
    %46 = vmatprep.subr.mxu0 0.0
    %47 = vmatpush1.msra.mxu0 %v32
    %48 = vmatprep.subr.mxu0 0.0
    %49 = vmatpush1.msra.mxu0 0.0
    %50 = vmatprep.subr.mxu0 0.0
    %51 = vmatpush1.msra.mxu0 0.0
    %52 = vmatprep.subr.mxu0 0.0
    %53 = vmatpush1.msra.mxu0 0.0
    %54 = vmatprep.subr.mxu0 0.0
    %55 = vmatpush1.msra.mxu0 0.0
    %56 = vmatprep.subr.mxu0 0.0
    %57 = vmatpush1.msra.mxu0 0.0
    %58 = vmatprep.subr.mxu0 0.0
    %59 = vmatpush1.msra.mxu0 0.0
    %60 = vmatprep.subr.mxu0 0.0
    %61 = vmatpush1.msra.mxu0 0.0
    %62 = vmatprep.subr.mxu0 0.0
    %63 = vmatpush1.msra.mxu0 0.0
    %64 = vmatprep.subr.mxu0 0.0
    %65 = vmatpush1.msra.mxu0 0.0
    %66 = vmatprep.subr.mxu0 0.0
    %67 = vmatpush1.msra.mxu0 0.0
    %68 = vmatprep.subr.mxu0 0.0
    %69 = vmatpush1.msra.mxu0 0.0
    %70 = vmatprep.subr.mxu0 0.0
    %71 = vmatpush1.msra.mxu0 0.0
    %72 = vmatprep.subr.mxu0 0.0
    %73 = vmatpush1.msra.mxu0 0.0
    %74 = vmatprep.subr.mxu0 0.0
    %75 = vmatpush1.msra.mxu0 0.0
    %76 = vmatprep.subr.mxu0 0.0
    %77 = vmatpush1.msra.mxu0 0.0
    %78 = vmatprep.subr.mxu0 0.0
    %79 = vmatpush1.msra.mxu0 0.0
    %80 = vmatprep.subr.mxu0 0.0
    %81 = vmatpush1.msra.mxu0 0.0
    %82 = vmatprep.subr.mxu0 0.0
    %83 = vmatpush1.msra.mxu0 0.0
    %84 = vmatprep.subr.mxu0 0.0
    %85 = vmatpush1.msra.mxu0 0.0
    %86 = vmatprep.subr.mxu0 0.0
    %87 = vmatpush1.msra.mxu0 0.0
    %88 = vmatprep.subr.mxu0 0.0
    %89 = vmatpush1.msra.mxu0 0.0
    %90 = vmatprep.subr.mxu0 0.0
    %91 = vmatpush1.msra.mxu0 0.0
    %92 = vmatprep.subr.mxu0 0.0
    %93 = vmatpush1.msra.mxu0 0.0
    %94 = vmatprep.subr.mxu0 0.0
    %95 = vmatpush1.msra.mxu0 0.0
    %96 = vmatprep.subr.mxu0 0.0
    %97 = vmatpush1.msra.mxu0 0.0
    %98 = vmatprep.subr.mxu0 0.0
    %99 = vmatpush1.msra.mxu0 0.0
    %100 = vmatprep.subr.mxu0 0.0
    %101 = vmatpush1.msra.mxu0 0.0
    %102 = vmatprep.subr.mxu0 0.0
    %103 = vmatpush1.msra.mxu0 0.0
    %104 = vmatprep.subr.mxu0 0.0
    %105 = vmatpush1.msra.mxu0 0.0
    %106 = vmatprep.subr.mxu0 0.0
    %107 = vmatpush1.msra.mxu0 0.0
    %108 = vmatprep.mubr.f32.mxu0 0.0
    %109 = vmatmul.mubr.f32.gmra.mrb[0].mxu0 %v42
    %v110 = vpop.f32.mrb[0].mxu0
    %v111 = vadd.f32 %v38, %v110
    %v112 = vpop.f32.mrb[0].mxu0
    %113 = vdwg.mxu0
    %v114 = vtanh.pop %v111
    %vm115 = vcmask 259072
    %116 = vst.msk [vmem:[#allocation2] sm:$0x3f] %vm115, %v114
    %v117 = vld [vmem:[%s3] sm:$0xff]
    %v118 = vld [vmem:[%s3 + $0x8] sm:$0xff]
    %v119 = vld [vmem:[%s3 + $0x10] sm:$0xff]
    %v120 = vld [vmem:[%s3 + $0x18] sm:$0xff]
    %v121 = vld [vmem:[%s3 + $0x20] sm:$0xff]
    %v122 = vld [vmem:[%s3 + $0x28] sm:$0xff]
    %v123 = vld [vmem:[%s3 + $0x30] sm:$0xff]
    %v124 = vld [vmem:[%s3 + $0x38] sm:$0xff]
    %v125 = vld [vmem:[%s4] sm:$0x1]
    %v126 = vld [vmem:[#allocation2] sm:$0x3]
    %v127 = vld [vmem:[#allocation2 + $0x2] sm:$0x3]
    %129 = vrot.lane.b32.xlu0 %v127, 32
    %v130 = vpop.permute.xlu0 %129
    %vm132 = vcmask 261120
    %v133 = vsel %vm132, %v126, %v130
    %v135 = vlaneseq
    %v136 = vshrl.u32 %v135, 7
    %v137 = vsub.s32 0, %v136
    %v138 = vrot.slane %v125, %v137
    %vm140 = vcmask 523264
    %v142 = vsel %vm140, %v133, 0
    %144 = vmatprep.subr.mxu0 0.0
    %145 = vmatpush1.msra.mxu0 %v117
    %146 = vmatprep.subr.mxu0 0.0
    %147 = vmatpush1.msra.mxu0 %v118
    %148 = vmatprep.subr.mxu0 0.0
    %149 = vmatpush1.msra.mxu0 %v119
    %150 = vmatprep.subr.mxu0 0.0
    %151 = vmatpush1.msra.mxu0 %v120
    %152 = vmatprep.subr.mxu0 0.0
    %153 = vmatpush1.msra.mxu0 %v121
    %154 = vmatprep.subr.mxu0 0.0
    %155 = vmatpush1.msra.mxu0 %v122
    %156 = vmatprep.subr.mxu0 0.0
    %157 = vmatpush1.msra.mxu0 %v123
    %158 = vmatprep.subr.mxu0 0.0
    %159 = vmatpush1.msra.mxu0 %v124
    %160 = vmatprep.subr.mxu0 0.0
    %161 = vmatpush1.msra.mxu0 0.0
    %162 = vmatprep.subr.mxu0 0.0
    %163 = vmatpush1.msra.mxu0 0.0
    %164 = vmatprep.subr.mxu0 0.0
    %165 = vmatpush1.msra.mxu0 0.0
    %166 = vmatprep.subr.mxu0 0.0
    %167 = vmatpush1.msra.mxu0 0.0
    %168 = vmatprep.subr.mxu0 0.0
    %169 = vmatpush1.msra.mxu0 0.0
    %170 = vmatprep.subr.mxu0 0.0
    %171 = vmatpush1.msra.mxu0 0.0
    %172 = vmatprep.subr.mxu0 0.0
    %173 = vmatpush1.msra.mxu0 0.0
    %174 = vmatprep.subr.mxu0 0.0
    %175 = vmatpush1.msra.mxu0 0.0
    %176 = vmatprep.subr.mxu0 0.0
    %177 = vmatpush1.msra.mxu0 0.0
    %178 = vmatprep.subr.mxu0 0.0
    %179 = vmatpush1.msra.mxu0 0.0
    %180 = vmatprep.subr.mxu0 0.0
    %181 = vmatpush1.msra.mxu0 0.0
    %182 = vmatprep.subr.mxu0 0.0
    %183 = vmatpush1.msra.mxu0 0.0
    %184 = vmatprep.subr.mxu0 0.0
    %185 = vmatpush1.msra.mxu0 0.0
    %186 = vmatprep.subr.mxu0 0.0
    %187 = vmatpush1.msra.mxu0 0.0
    %188 = vmatprep.subr.mxu0 0.0
    %189 = vmatpush1.msra.mxu0 0.0
    %190 = vmatprep.subr.mxu0 0.0
    %191 = vmatpush1.msra.mxu0 0.0
    %192 = vmatprep.subr.mxu0 0.0
    %193 = vmatpush1.msra.mxu0 0.0
    %194 = vmatprep.subr.mxu0 0.0
    %195 = vmatpush1.msra.mxu0 0.0
    %196 = vmatprep.subr.mxu0 0.0
    %197 = vmatpush1.msra.mxu0 0.0
    %198 = vmatprep.subr.mxu0 0.0
    %199 = vmatpush1.msra.mxu0 0.0
    %200 = vmatprep.subr.mxu0 0.0
    %201 = vmatpush1.msra.mxu0 0.0
    %202 = vmatprep.subr.mxu0 0.0
    %203 = vmatpush1.msra.mxu0 0.0
    %204 = vmatprep.subr.mxu0 0.0
    %205 = vmatpush1.msra.mxu0 0.0
    %206 = vmatprep.subr.mxu0 0.0
    %207 = vmatpush1.msra.mxu0 0.0
    %208 = vmatprep.mubr.f32.mxu0 0.0
    %209 = vmatmul.mubr.f32.gmra.mrb[0].mxu0 %v142
    %v210 = vpop.f32.mrb[0].mxu0
    %v211 = vadd.f32 %v138, %v210
    %v212 = vpop.f32.mrb[0].mxu0
    %213 = vdwg.mxu0
    %v214 = vtanh.pop %v211
    %vm215 = vcmask 254976
    %216 = vst.msk [vmem:[#allocation2 + $0x6] sm:$0x3] %vm215, %v214
    %v217 = vld [vmem:[#allocation2 + $0x6] sm:$0x3]
    %v218 = vld [vmem:[#allocation2 + $0x4] sm:$0x3]
    %220 = vrot.lane.b32.xlu0 %v218, 32
    %v221 = vpop.permute.xlu0 %220
    %v223 = vsel %vm132, %v217, %v221
    %v225 = vsel %vm140, %v223, 0
    %227 = vmatprep.subr.mxu0 0.0
    %228 = vmatpush1.msra.mxu0 %v117
    %229 = vmatprep.subr.mxu0 0.0
    %230 = vmatpush1.msra.mxu0 %v118
    %231 = vmatprep.subr.mxu0 0.0
    %232 = vmatpush1.msra.mxu0 %v119
    %233 = vmatprep.subr.mxu0 0.0
    %234 = vmatpush1.msra.mxu0 %v120
    %235 = vmatprep.subr.mxu0 0.0
    %236 = vmatpush1.msra.mxu0 %v121
    %237 = vmatprep.subr.mxu0 0.0
    %238 = vmatpush1.msra.mxu0 %v122
    %239 = vmatprep.subr.mxu0 0.0
    %240 = vmatpush1.msra.mxu0 %v123
    %241 = vmatprep.subr.mxu0 0.0
    %242 = vmatpush1.msra.mxu0 %v124
    %243 = vmatprep.subr.mxu0 0.0
    %244 = vmatpush1.msra.mxu0 0.0
    %245 = vmatprep.subr.mxu0 0.0
    %246 = vmatpush1.msra.mxu0 0.0
    %247 = vmatprep.subr.mxu0 0.0
    %248 = vmatpush1.msra.mxu0 0.0
    %249 = vmatprep.subr.mxu0 0.0
    %250 = vmatpush1.msra.mxu0 0.0
    %251 = vmatprep.subr.mxu0 0.0
    %252 = vmatpush1.msra.mxu0 0.0
    %253 = vmatprep.subr.mxu0 0.0
    %254 = vmatpush1.msra.mxu0 0.0
    %255 = vmatprep.subr.mxu0 0.0
    %256 = vmatpush1.msra.mxu0 0.0
    %257 = vmatprep.subr.mxu0 0.0
    %258 = vmatpush1.msra.mxu0 0.0
    %259 = vmatprep.subr.mxu0 0.0
    %260 = vmatpush1.msra.mxu0 0.0
    %261 = vmatprep.subr.mxu0 0.0
    %262 = vmatpush1.msra.mxu0 0.0
    %263 = vmatprep.subr.mxu0 0.0
    %264 = vmatpush1.msra.mxu0 0.0
    %265 = vmatprep.subr.mxu0 0.0
    %266 = vmatpush1.msra.mxu0 0.0
    %267 = vmatprep.subr.mxu0 0.0
    %268 = vmatpush1.msra.mxu0 0.0
    %269 = vmatprep.subr.mxu0 0.0
    %270 = vmatpush1.msra.mxu0 0.0
    %271 = vmatprep.subr.mxu0 0.0
    %272 = vmatpush1.msra.mxu0 0.0
    %273 = vmatprep.subr.mxu0 0.0
    %274 = vmatpush1.msra.mxu0 0.0
    %275 = vmatprep.subr.mxu0 0.0
    %276 = vmatpush1.msra.mxu0 0.0
    %277 = vmatprep.subr.mxu0 0.0
    %278 = vmatpush1.msra.mxu0 0.0
    %279 = vmatprep.subr.mxu0 0.0
    %280 = vmatpush1.msra.mxu0 0.0
    %281 = vmatprep.subr.mxu0 0.0
    %282 = vmatpush1.msra.mxu0 0.0
    %283 = vmatprep.subr.mxu0 0.0
    %284 = vmatpush1.msra.mxu0 0.0
    %285 = vmatprep.subr.mxu0 0.0
    %286 = vmatpush1.msra.mxu0 0.0
    %287 = vmatprep.subr.mxu0 0.0
    %288 = vmatpush1.msra.mxu0 0.0
    %289 = vmatprep.subr.mxu0 0.0
    %290 = vmatpush1.msra.mxu0 0.0
    %291 = vmatprep.mubr.f32.mxu0 0.0
    %292 = vmatmul.mubr.f32.gmra.mrb[0].mxu0 %v225
    %v293 = vpop.f32.mrb[0].mxu0
    %v294 = vadd.f32 %v138, %v293
    %v295 = vpop.f32.mrb[0].mxu0
    %296 = vdwg.mxu0
    %v297 = vtanh.pop %v294
    %298 = vst.msk [vmem:[#allocation2 + $0x8] sm:$0x3] %vm215, %v297
    %v299 = vld [vmem:[#allocation2 + $0x8] sm:$0x3]
    %300 = vst.msk [vmem:[#allocation3] sm:$0x3] %vm215, %v299
    %v301 = vld [vmem:[%s5] sm:$0xff]
    %v302 = vld [vmem:[%s5 + $0x8] sm:$0xff]
    %v303 = vld [vmem:[%s5 + $0x10] sm:$0xff]
    %v304 = vld [vmem:[%s5 + $0x18] sm:$0xff]
    %v305 = vld [vmem:[%s6] sm:$0x1]
    %v307 = vlaneseq
    %v308 = vshrl.u32 %v307, 7
    %v309 = vsub.s32 0, %v308
    %v310 = vrot.slane %v305, %v309
    %v313 = vsel %vm132, %v299, 0
    %315 = vmatprep.subr.mxu0 0.0
    %316 = vmatpush1.msra.mxu0 %v301
    %317 = vmatprep.subr.mxu0 0.0
    %318 = vmatpush1.msra.mxu0 %v302
    %319 = vmatprep.subr.mxu0 0.0
    %320 = vmatpush1.msra.mxu0 %v303
    %321 = vmatprep.subr.mxu0 0.0
    %322 = vmatpush1.msra.mxu0 %v304
    %323 = vmatprep.subr.mxu0 0.0
    %324 = vmatpush1.msra.mxu0 0.0
    %325 = vmatprep.subr.mxu0 0.0
    %326 = vmatpush1.msra.mxu0 0.0
    %327 = vmatprep.subr.mxu0 0.0
    %328 = vmatpush1.msra.mxu0 0.0
    %329 = vmatprep.subr.mxu0 0.0
    %330 = vmatpush1.msra.mxu0 0.0
    %331 = vmatprep.subr.mxu0 0.0
    %332 = vmatpush1.msra.mxu0 0.0
    %333 = vmatprep.subr.mxu0 0.0
    %334 = vmatpush1.msra.mxu0 0.0
    %335 = vmatprep.subr.mxu0 0.0
    %336 = vmatpush1.msra.mxu0 0.0
    %337 = vmatprep.subr.mxu0 0.0
    %338 = vmatpush1.msra.mxu0 0.0
    %339 = vmatprep.subr.mxu0 0.0
    %340 = vmatpush1.msra.mxu0 0.0
    %341 = vmatprep.subr.mxu0 0.0
    %342 = vmatpush1.msra.mxu0 0.0
    %343 = vmatprep.subr.mxu0 0.0
    %344 = vmatpush1.msra.mxu0 0.0
    %345 = vmatprep.subr.mxu0 0.0
    %346 = vmatpush1.msra.mxu0 0.0
    %347 = vmatprep.subr.mxu0 0.0
    %348 = vmatpush1.msra.mxu0 0.0
    %349 = vmatprep.subr.mxu0 0.0
    %350 = vmatpush1.msra.mxu0 0.0
    %351 = vmatprep.subr.mxu0 0.0
    %352 = vmatpush1.msra.mxu0 0.0
    %353 = vmatprep.subr.mxu0 0.0
    %354 = vmatpush1.msra.mxu0 0.0
    %355 = vmatprep.subr.mxu0 0.0
    %356 = vmatpush1.msra.mxu0 0.0
    %357 = vmatprep.subr.mxu0 0.0
    %358 = vmatpush1.msra.mxu0 0.0
    %359 = vmatprep.subr.mxu0 0.0
    %360 = vmatpush1.msra.mxu0 0.0
    %361 = vmatprep.subr.mxu0 0.0
    %362 = vmatpush1.msra.mxu0 0.0
    %363 = vmatprep.subr.mxu0 0.0
    %364 = vmatpush1.msra.mxu0 0.0
    %365 = vmatprep.subr.mxu0 0.0
    %366 = vmatpush1.msra.mxu0 0.0
    %367 = vmatprep.subr.mxu0 0.0
    %368 = vmatpush1.msra.mxu0 0.0
    %369 = vmatprep.subr.mxu0 0.0
    %370 = vmatpush1.msra.mxu0 0.0
    %371 = vmatprep.subr.mxu0 0.0
    %372 = vmatpush1.msra.mxu0 0.0
    %373 = vmatprep.subr.mxu0 0.0
    %374 = vmatpush1.msra.mxu0 0.0
    %375 = vmatprep.subr.mxu0 0.0
    %376 = vmatpush1.msra.mxu0 0.0
    %377 = vmatprep.subr.mxu0 0.0
    %378 = vmatpush1.msra.mxu0 0.0
    %379 = vmatprep.mubr.f32.mxu0 0.0
    %380 = vmatmul.mubr.f32.gmra.mrb[0].mxu0 %v313
    %v381 = vpop.f32.mrb[0].mxu0
    %v382 = vadd.f32 %v310, %v381
    %v383 = vpop.f32.mrb[0].mxu0
    %384 = vdwg.mxu0
    %vm385 = vcmask 58368
    %v386 = vsel %vm385, %v382, -inf
    %387 = vmax.xlane.f32.xlu0 %v386
    %v388 = vpop.xlane.xlu0 %387
    %v389 = vsub.f32 %v382, %v388
    %v390 = vmul.f32 %v389, 1.442695
    %v391 = vpow.pop %v390
    %v392 = vsel %vm385, %v391, 0.0
    %393 = vadd.xlane.f32.xlu0 %v392
    %v394 = vpop.xlane.xlu0 %393
    %v395 = vlog2.pop %v394
    %v396 = vmul.f32 %v395, 0.6931472
    %v397 = vsub.f32 %v389, %v396
    %398 = vst.msk [vmem:[#allocation5] sm:$0x3] %vm385, %v397
    // Predicated region
    $region30: #{_fused_forward.1} parent=1 // pred_check
      _
    $region31: #{_fused_forward.1} parent=1 // pred_check_branch
      %400 = sbr.rel (0) target = $region33
    $region32: #{_fused_forward.1} parent=1 // pred_region
      %s402 = ssub.s32 32, 32
      %403 = vsyncadd [#allocation4], %s402
      %s405 = sshll.u32 [#allocation3], 4
      %s406 = int_to_ptr.vmem [resolvable:$true] %s405
      %408 = dma.vmem_to_hbm [thread:$0]  %s406, 32, %s7, [#allocation4]
    $region33: #{_fused_forward.1} parent=1 // pred_fallthru
      _
    // Predicated region
    $region34: #{_fused_forward.1} parent=1 // pred_check
      _
    $region35: #{_fused_forward.1} parent=1 // pred_check_branch
      %410 = sbr.rel (0) target = $region37
    $region36: #{_fused_forward.1} parent=1 // pred_region
      %s412 = ssub.s32 32, 32
      %413 = vsyncadd [#allocation6], %s412
      %s415 = sshll.u32 [#allocation5], 4
      %s416 = int_to_ptr.vmem [resolvable:$true] %s415
      %418 = dma.vmem_to_hbm [thread:$0]  %s416, 32, %s8, [#allocation6]
    $region37: #{_fused_forward.1} parent=1 // pred_fallthru
      _
    // Predicated region
    $region38: #{_fused_forward.1} parent=1 // pred_check
      _
    $region39: #{_fused_forward.1} parent=1 // pred_check_branch
      %420 = sbr.rel (0) target = $region41
    $region40: #{_fused_forward.1} parent=1 // pred_region
      %421 = dma.done [#allocation4], 32
    $region41: #{_fused_forward.1} parent=1 // pred_fallthru
      _
    // Predicated region
    $region42: #{_fused_forward.1} parent=1 // pred_check
      _
    $region43: #{_fused_forward.1} parent=1 // pred_check_branch
      %423 = sbr.rel (0) target = $region45
    $region44: #{_fused_forward.1} parent=1 // pred_region
      %424 = dma.done [#allocation6], 32
    $region45: #{_fused_forward.1} parent=1 // pred_fallthru
      _
    %425 = vsyncpa [#allocation4], 1
    %426 = vsyncpa [#allocation6], 1

</llo_original>
